<compile_context>
chip_gen: v6e
topology: v6e:2x2x1
jax: 0.10.0
libtpu: 0.0.40
codegen_flags: <defaults>
</compile_context>

<pallas_src>
from functools import partial

import numpy as np
import jax
import jax.numpy as jnp
from jax.experimental import pallas as pl
from jax.experimental.pallas import tpu as pltpu


def get_sinusoid_encoding(num_tokens: int, token_len: int) -> np.ndarray:
    """Sinusoid encoding table, identical math to the PyTorch reference."""
    def get_position_angle_vec(i):
        return [i / np.power(10000, 2 * (j // 2) / token_len) for j in range(token_len)]

    sinusoid_table = np.array(
        [get_position_angle_vec(i) for i in range(num_tokens)], dtype=np.float64
    )
    sinusoid_table[:, 0::2] = np.sin(sinusoid_table[:, 0::2])
    sinusoid_table[:, 1::2] = np.cos(sinusoid_table[:, 1::2])
    # (1, num_tokens, token_len), float32 — matches torch.FloatTensor(...).unsqueeze(0)
    return sinusoid_table[None, :, :].astype(np.float32)


def _pos_add_kernel(x_ref, pos_ref, o_ref):
    # x_ref: (bt, N, D) tile; pos_ref: (1, N, D) resident f32 table (broadcast add).
    # Add in f32 so bf16 activations still accumulate against the full-precision table.
    o_ref[...] = (x_ref[...].astype(jnp.float32) + pos_ref[...]).astype(o_ref.dtype)


def _vmem_budget():
    """(target_tile_bytes, vmem_limit_bytes) per chip generation."""
    try:
        vmem_cap = pltpu.get_tpu_info().vmem_capacity_bytes
    except Exception:
        vmem_cap = 64 << 20  # conservative (v7x-like) fallback
    if vmem_cap >= (100 << 20):       # v5e / v6e: 128 MiB physical VMEM
        return 8 << 20, 64 << 20
    return 4 << 20, 32 << 20          # v7x: 64 MiB per TensorCore


def _choose_batch_tile(batch: int, row_bytes: int, target_tile_bytes: int) -> int:
    """Batch rows of x per grid step: big tiles, >=2 (preferably even #) grid steps."""
    bt = max(1, min(batch, target_tile_bytes // max(row_bytes, 1)))
    if batch >= 2:
        bt = min(bt, max(1, batch // 2))   # >=2 steps -> both v7x TensorCores used
    while batch % bt:                      # keep blocks non-ragged
        bt -= 1
    # Prefer an even step count (2 TCs split the parallel axis), if it costs <=2x tile.
    if (batch // bt) % 2 and batch % 2 == 0:
        alt = bt
        while alt > 1 and ((batch % alt) or (batch // alt) % 2):
            alt -= 1
        if batch % alt == 0 and (batch // alt) % 2 == 0 and alt >= max(1, bt // 2):
            bt = alt
    return bt


@jax.jit
def positional_encoding(x: jax.Array, pos_embed: jax.Array) -> jax.Array:
    """x: (B, N, D); pos_embed: (1, N, D) float32. Returns x + pos_embed (dtype of x)."""
    B, N, D = x.shape
    assert pos_embed.shape == (1, N, D)
    pos = pos_embed.astype(jnp.float32)    # table stays f32; add is done in f32 in-kernel

    target_tile_bytes, vmem_limit = _vmem_budget()
    row_bytes = N * D * jnp.dtype(x.dtype).itemsize
    bt = _choose_batch_tile(B, row_bytes, target_tile_bytes)
    grid = (B // bt,)

    return pl.pallas_call(
        _pos_add_kernel,
        out_shape=jax.ShapeDtypeStruct((B, N, D), x.dtype),
        grid=grid,
        in_specs=[
            pl.BlockSpec((bt, N, D), lambda i: (i, 0, 0)),  # x: bt batch rows / step
            pl.BlockSpec((1, N, D), lambda i: (0, 0, 0)),   # pos: constant block -> resident
        ],
        out_specs=pl.BlockSpec((bt, N, D), lambda i: (i, 0, 0)),
        compiler_params=pltpu.CompilerParams(
            dimension_semantics=("parallel",),
            vmem_limit_bytes=vmem_limit,
        ),
    )(x, pos)


class PositionalEncoding:
    """JAX/Pallas equivalent of the PyTorch PositionalEncoding module."""

    def __init__(self, embed_dim: int, seq_len: int):
        # Stored once in f32 (matches nn.Parameter FloatTensor, requires_grad=False).
        self.pos_embed = jnp.asarray(
            get_sinusoid_encoding(num_tokens=int(seq_len + 1), token_len=int(embed_dim))
        )

    def __call__(self, x: jax.Array) -> jax.Array:
        return positional_encoding(x, self.pos_embed)


if __name__ == "__main__":
    embed_dim = 32
    seq_len = 8          # -> num tokens N = seq_len + 1 = 9 (includes CLS token)
    batch = 2

    module = PositionalEncoding(embed_dim=embed_dim, seq_len=seq_len)

    key = jax.random.PRNGKey(0)
    x = jax.random.normal(key, (batch, seq_len + 1, embed_dim), dtype=jnp.float32)

    out = jax.block_until_ready(module(x))

    # f32 correctness vs. plain-JAX reference.
    ref = x + module.pos_embed
    np.testing.assert_allclose(np.asarray(out), np.asarray(ref), rtol=1e-6, atol=1e-6)

    # bf16 activations: f32 add inside the kernel, cast once at the end.
    x_bf16 = x.astype(jnp.bfloat16)
    out_bf16 = jax.block_until_ready(module(x_bf16))
    ref_bf16 = (x_bf16.astype(jnp.float32) + module.pos_embed).astype(jnp.bfloat16)
    np.testing.assert_allclose(
        np.asarray(out_bf16, dtype=np.float32),
        np.asarray(ref_bf16, dtype=np.float32),
        rtol=1e-2, atol=1e-2,
    )

    print("KERNEL_OK")
</pallas_src>

<mosaic_0001>
module attributes {stable_mosaic.version = 11 : i64} {
  func.func @_pos_add_kernel(%arg0: i32, %arg1: memref<1x9x32xf32, #tpu.memory_space<vmem>>, %arg2: memref<1x9x32xf32, #tpu.memory_space<vmem>>, %arg3: memref<1x9x32xf32, #tpu.memory_space<vmem>>) attributes {dimension_semantics = [#tpu.dimension_semantics<parallel>], iteration_bounds = array<i64: 2>, scalar_prefetch = 0 : i64, scratch_operands = 0 : i64, tpu.core_type = #tpu.core_type<tc>, window_params = [{transform_indices = @transform_0, window_bounds = array<i64: 1, 9, 32>}, {pipeline_mode = #tpu.pipeline_mode<synchronous>, transform_indices = @transform_1, window_bounds = array<i64: 1, 9, 32>}, {transform_indices = @transform_2, window_bounds = array<i64: 1, 9, 32>}]} {
    %c0 = arith.constant 0 : index
    %c0_0 = arith.constant 0 : index
    %c0_1 = arith.constant 0 : index
    %0 = vector.load %arg1[%c0, %c0_0, %c0_1] : memref<1x9x32xf32, #tpu.memory_space<vmem>>, vector<1x9x32xf32>
    %c0_2 = arith.constant 0 : index
    %c0_3 = arith.constant 0 : index
    %c0_4 = arith.constant 0 : index
    %1 = vector.load %arg2[%c0_2, %c0_3, %c0_4] : memref<1x9x32xf32, #tpu.memory_space<vmem>>, vector<1x9x32xf32>
    %2 = arith.addf %0, %1 : vector<1x9x32xf32>
    %c0_5 = arith.constant 0 : index
    %c0_6 = arith.constant 0 : index
    %c0_7 = arith.constant 0 : index
    %3 = vector.load %arg3[%c0_5, %c0_6, %c0_7] : memref<1x9x32xf32, #tpu.memory_space<vmem>>, vector<1x9x32xf32>
    tpu.vector_store %arg3[%c0_5, %c0_6, %c0_7], %2 {strides = array<i32>} : memref<1x9x32xf32, #tpu.memory_space<vmem>>, vector<1x9x32xf32>,
    return
  }
  func.func @transform_0(%arg0: i32) -> (i32, i32, i32) {
    %c0_i32 = arith.constant 0 : i32
    %c0_i32_0 = arith.constant 0 : i32
    %c0_i32_1 = arith.constant 0 : i32
    return %arg0, %c0_i32, %c0_i32_0 : i32, i32, i32
  }
  func.func @transform_1(%arg0: i32) -> (i32, i32, i32) {
    %c0_i32 = arith.constant 0 : i32
    %c0_i32_0 = arith.constant 0 : i32
    %c0_i32_1 = arith.constant 0 : i32
    %c0_i32_2 = arith.constant 0 : i32
    return %c0_i32, %c0_i32_0, %c0_i32_1 : i32, i32, i32
  }
  func.func @transform_2(%arg0: i32) -> (i32, i32, i32) {
    %c0_i32 = arith.constant 0 : i32
    %c0_i32_0 = arith.constant 0 : i32
    %c0_i32_1 = arith.constant 0 : i32
    return %arg0, %c0_i32, %c0_i32_0 : i32, i32, i32
  }
}

</mosaic_0001>

<llo_original>
// kernel: positional_encoding.1
$region0: #{positional_encoding.1}
  #allocation0 [shape = 'u32[]', space=smem, size = 0x4, offset = 0x4, fixed_abs, tag = 'smem constant byte address 0x4 - core index']
  #allocation1 [shape = 'u32[144,128]{1,0:T(1,128)}', space=vmem, size = 0x12000, scoped, tag = 'internal scratch']
  %s0 = inlined_call_operand.vmem [shape: f32[2,9,32], index: 0, kind: input, shape index: {}]
  %s1 = inlined_call_operand.vmem [shape: f32[1,9,32], index: 1, kind: input, shape index: {}]
  %s2 = inlined_call_operand.vmem [shape: f32[2,9,32], index: 2, kind: output, shape index: {}]
  %s3 = sld [smem:[#allocation0]]
  $region41: #{positional_encoding.1} parent=0
    _
  %s5 = ssub.s32 1, %s3
  %s6 = scalar_select 0, %s5, %s3
  loop: start=0, step=1, limit=4
  $region2: #{positional_encoding.1} parent=0 // loop_pre_header
    _
  $region3: #{positional_encoding.1} parent=0 // loop_header
    %s8 = sphi 0, %s12
    %p9 = scmp.ge.s32.totalorder %s8, 4
    %s18 = sphi 0, %s20
    %s21 = sphi 0, %s18
    %s22 = sphi 0, %s21
    %s38 = sphi 0, %s22
    %s42 = sphi 0, %s42
    %s44 = sphi 0, %s42
    %s45 = sphi 0, %s44
    %s59 = sphi 0, %s45
    %s65 = sphi 0, %s67
    %s68 = sphi 0, %s65
    %s69 = sphi 0, %s68
    %s85 = sphi 0, %s69
  $region4: #{positional_encoding.1} parent=0 // loop_header_branch
    %11 = sbr.rel (%p9) target = $region8
  $region5: #{positional_encoding.1} parent=0 // loop_body
    %s13 = ssub.s32 %s8, 1
    %s14 = ssub.s32 %s8, 2
    %s15 = sadd.s32 %s8, 1
    %s16 = ssub.s32 %s8, %s15
    %p17 = scmp.eq.s32.totalorder %s16, 0
    %s19 = sadd.s32 %s18, 1
    %s20 = scalar_select %p17, %s18, %s19
    %p23 = pneg %p17
    %p24 = scmp.eq.s32.totalorder %s8, 1
    %p25 = por %p23, %p24
    %p26 = scmp.ne.s32.totalorder %s18, %s21
    %p27 = scmp.eq.s32.totalorder %s8, 0
    %p28 = por %p26, %p27
    %p29 = scmp.ne.s32.totalorder %s18, %s21
    %p30 = scmp.eq.s32.totalorder %s13, 1
    %p31 = por %p29, %p30
    %p32 = scmp.ne.s32.totalorder %s21, %s22
    %p33 = scmp.eq.s32.totalorder %s13, 0
    %p34 = por %p32, %p33
    %p35 = scmp.ne.s32.totalorder %s21, %s22
    %p36 = scmp.eq.s32.totalorder %s14, 1
    %p37 = por %p35, %p36
    %p39 = scmp.ne.s32.totalorder %s22, %s38
    %p40 = scmp.eq.s32.totalorder %s14, 0
    %p41 = por %p39, %p40
    %s43 = sadd.s32 %s42, 1
    %p46 = scmp.eq.s32.totalorder %s8, 1
    %p47 = scmp.ne.s32.totalorder %s42, %s44
    %p48 = scmp.eq.s32.totalorder %s8, 0
    %p49 = por %p47, %p48
    %p50 = scmp.ne.s32.totalorder %s42, %s44
    %p51 = scmp.eq.s32.totalorder %s13, 1
    %p52 = por %p50, %p51
    %p53 = scmp.ne.s32.totalorder %s44, %s45
    %p54 = scmp.eq.s32.totalorder %s13, 0
    %p55 = por %p53, %p54
    %p56 = scmp.ne.s32.totalorder %s44, %s45
    %p57 = scmp.eq.s32.totalorder %s14, 1
    %p58 = por %p56, %p57
    %p60 = scmp.ne.s32.totalorder %s45, %s59
    %p61 = scmp.eq.s32.totalorder %s14, 0
    %p62 = por %p60, %p61
    %s63 = ssub.s32 %s8, %s15
    %p64 = scmp.eq.s32.totalorder %s63, 0
    %s66 = sadd.s32 %s65, 1
    %s67 = scalar_select %p64, %s65, %s66
    %p70 = pneg %p64
    %p71 = scmp.eq.s32.totalorder %s8, 1
    %p72 = por %p70, %p71
    %p73 = scmp.ne.s32.totalorder %s65, %s68
    %p74 = scmp.eq.s32.totalorder %s8, 0
    %p75 = por %p73, %p74
    %p76 = scmp.ne.s32.totalorder %s65, %s68
    %p77 = scmp.eq.s32.totalorder %s13, 1
    %p78 = por %p76, %p77
    %p79 = scmp.ne.s32.totalorder %s68, %s69
    %p80 = scmp.eq.s32.totalorder %s13, 0
    %p81 = por %p79, %p80
    %p82 = scmp.ne.s32.totalorder %s68, %s69
    %p83 = scmp.eq.s32.totalorder %s14, 1
    %p84 = por %p82, %p83
    %p86 = scmp.ne.s32.totalorder %s69, %s85
    %p87 = scmp.eq.s32.totalorder %s14, 0
    %p88 = por %p86, %p87
    %p89 = scmp.le.s32.totalorder 1, %s8
    %p90 = scmp.lt.s32.totalorder %s8, 3
    %p91 = pnand %p89, %p90
    %p92 = pneg %p91
    // Predicated region
    $region9: #{positional_encoding.1} parent=5 // pred_check
      _
    $region10: #{positional_encoding.1} parent=5 // pred_check_branch
      %94 = sbr.rel (%p91) target = $region12
    $region11: #{positional_encoding.1} parent=5 // pred_region
      %s95 = ssub.s32 %s8, 1
      // Predicated region
      $region13: #{positional_encoding.1} parent=11 // pred_check
        %p96 = pneg %p55
      $region14: #{positional_encoding.1} parent=11 // pred_check_branch
        %98 = sbr.rel (%p96) target = $region16
      $region15: #{positional_encoding.1} parent=11 // pred_region
        _
      $region16: #{positional_encoding.1} parent=11 // pred_fallthru
        _
    $region12: #{positional_encoding.1} parent=5 // pred_fallthru
      _
    %p99 = scmp.lt.s32.totalorder %s8, 2
    // Predicated region
    $region17: #{positional_encoding.1} parent=5 // pred_check
      %p100 = pneg %p99
    $region18: #{positional_encoding.1} parent=5 // pred_check_branch
      %102 = sbr.rel (%p100) target = $region20
    $region19: #{positional_encoding.1} parent=5 // pred_region
      // Predicated region
      $region21: #{positional_encoding.1} parent=19 // pred_check
        %p103 = pneg %p28
      $region22: #{positional_encoding.1} parent=19 // pred_check_branch
        %105 = sbr.rel (%p103) target = $region24
      $region23: #{positional_encoding.1} parent=19 // pred_region
        %p106 = scmp.lt.s32.totalorder %s8, 1
        %s107 = scalar_select %p106, %s8, 1
        %s108 = smul.addr %s107, 2
        %s109 = smul.addr %s108, 8
        %s110 = scalar_lea.vmem %s0, %s109
      $region24: #{positional_encoding.1} parent=19 // pred_fallthru
        _
    $region20: #{positional_encoding.1} parent=5 // pred_fallthru
      _
    %p111 = scmp.le.s32.totalorder 1, %s8
    %p112 = scmp.lt.s32.totalorder %s8, 3
    %p113 = pnand %p111, %p112
    %p114 = pneg %p113
    // Predicated region
    $region25: #{positional_encoding.1} parent=5 // pred_check
      _
    $region26: #{positional_encoding.1} parent=5 // pred_check_branch
      %116 = sbr.rel (%p113) target = $region28
    $region27: #{positional_encoding.1} parent=5 // pred_region
      %s117 = ssub.s32 %s8, 1
      %p118 = scmp.lt.s32.totalorder %s13, 1
      %s119 = scalar_select %p118, %s13, 1
      %s120 = smul.addr %s119, 2
      %s121 = smul.addr %s120, 8
      %s122 = scalar_lea.vmem %s0, %s121
      %p123 = pneg %p34
      %p124 = pneg %p31
      %p125 = pneg %p55
      %p126 = pneg %p52
      %p127 = pneg %p81
      %p128 = pneg %p78
      %p129 = scmp.lt.s32.totalorder %s13, 1
      %s130 = scalar_select %p129, %s13, 1
      %s131 = smul.addr %s130, 2
      %s132 = smul.addr %s131, 8
      %s133 = scalar_lea.vmem %s2, %s132
      %p134 = scmp.lt.s32.totalorder %s13, 1
      %s135 = scalar_select %p134, %s13, 1
      %s136 = smul.addr %s135, 2
      %s137 = smul.addr %s136, 8
      %s138 = scalar_lea.vmem %s0, %s137
      %p139 = scmp.lt.s32.totalorder %s13, 1
      %s140 = scalar_select %p139, %s13, 1
      %s141 = smul.addr %s140, 2
      %s142 = smul.addr %s141, 8
      %s143 = scalar_lea.vmem %s2, %s142
      %v144 = vld [vmem:[%s138] sm:$0xff]
      %v145 = vld [vmem:[%s138 + $0x8] sm:$0x1]
      %v146 = vld [vmem:[%s1] sm:$0xff]
      %v147 = vld [vmem:[%s1 + $0x8] sm:$0x1]
      %v148 = vadd.f32 %v144, %v146
      %v149 = vadd.f32 %v145, %v147
      %vm150 = vcmask 261120
      %151 = vst.msk [vmem:[%s143] sm:$0xff] %vm150, %v148
      %vm152 = vcmask 253952
      %153 = vst.msk [vmem:[%s143 + $0x8] sm:$0x1] %vm152, %v149
      %p154 = scmp.lt.s32.totalorder %s13, 1
      %s155 = scalar_select %p154, %s13, 1
      %s156 = smul.addr %s155, 2
      %s157 = smul.addr %s156, 8
      %s158 = scalar_lea.vmem %s2, %s157
      // Predicated region
      $region29: #{positional_encoding.1} parent=27 // pred_check
        %p159 = pneg %p78
      $region30: #{positional_encoding.1} parent=27 // pred_check_branch
        %161 = sbr.rel (%p159) target = $region32
      $region31: #{positional_encoding.1} parent=27 // pred_region
        _
      $region32: #{positional_encoding.1} parent=27 // pred_fallthru
        _
    $region28: #{positional_encoding.1} parent=5 // pred_fallthru
      _
    %p162 = scmp.le.s32.totalorder 2, %s8
    // Predicated region
    $region33: #{positional_encoding.1} parent=5 // pred_check
      %p163 = pneg %p162
    $region34: #{positional_encoding.1} parent=5 // pred_check_branch
      %165 = sbr.rel (%p163) target = $region36
    $region35: #{positional_encoding.1} parent=5 // pred_region
      %s166 = ssub.s32 %s8, 2
      // Predicated region
      $region37: #{positional_encoding.1} parent=35 // pred_check
        %p167 = pneg %p84
      $region38: #{positional_encoding.1} parent=35 // pred_check_branch
        %169 = sbr.rel (%p167) target = $region40
      $region39: #{positional_encoding.1} parent=35 // pred_region
        %p170 = scmp.lt.s32.totalorder %s14, 1
        %s171 = scalar_select %p170, %s14, 1
        %s172 = smul.addr %s171, 2
        %s173 = smul.addr %s172, 8
        %s174 = scalar_lea.vmem %s2, %s173
      $region40: #{positional_encoding.1} parent=35 // pred_fallthru
        _
    $region36: #{positional_encoding.1} parent=5 // pred_fallthru
      _
  $region6: #{positional_encoding.1} parent=0 // loop_footer
    %s12 = sadd.s32 1, %s8
  $region7: #{positional_encoding.1} parent=0 // loop_footer_branch
    %7 = sbr.rel target = $region3
  $region8: #{positional_encoding.1} parent=0 // loop_exit
    _

</llo_original>
